<compile_context>
chip_gen: v5e
topology: v5e:2x2
jax: 0.10.0
libtpu: 0.0.40
codegen_flags: <defaults>
</compile_context>

<pallas_src>
import jax
import jax.numpy as jnp
from jax import lax
from jax.experimental import pallas as pl
from jax.experimental.pallas import tpu as pltpu


def _round_up(a: int, b: int) -> int:
    return ((a + b - 1) // b) * b


def _lmhead_kernel(x_ref, w_ref, b_ref, o_ref):
    # x_ref: (tm, E)   w_ref: (tn, E)   b_ref: (1, tn)   o_ref: (tm, tn)
    # Contract x's dim 1 with w's dim 1  ==  x @ w.T : the MXU consumes the
    # weight in its native (V, E) layout, no transpose copy on host or in-kernel.
    acc = lax.dot_general(
        x_ref[...],
        w_ref[...],
        dimension_numbers=(((1,), (1,)), ((), ())),
        preferred_element_type=jnp.float32,
    )
    o_ref[...] = (acc + b_ref[...].astype(jnp.float32)).astype(o_ref.dtype)


def _vmem_budget_bytes() -> int:
    """~0.75 of physical VMEM (v5e/v6e: 128 MiB -> 96 MiB, v7x: 64 MiB/TC -> 48 MiB)."""
    try:
        cap = int(getattr(pltpu.get_tpu_info(), "vmem_capacity_bytes", 0))
        if cap > 0:
            return (3 * cap) // 4
    except Exception:
        pass
    return 48 << 20  # conservative fallback: fits every generation


def lm_head(x, weight, bias, *, tm=512, tn=2048, out_dtype=None):
    """Compute x @ weight.T + bias with a Pallas TPU kernel.

    x:      (B, S, E)
    weight: (V, E)   -- PyTorch nn.Linear convention (never transposed/padded on host)
    bias:   (V,)
    returns (B, S, V) in `out_dtype` (default: x.dtype)
    """
    B, S, E = x.shape
    V, E_w = weight.shape
    assert E_w == E and bias.shape == (V,)
    out_dtype = x.dtype if out_dtype is None else out_dtype

    M = B * S
    x2d = x.reshape(M, E)          # free (contiguous)
    b2d = bias.reshape(1, V)       # tiny

    x_size = jnp.dtype(x.dtype).itemsize
    w_size = jnp.dtype(weight.dtype).itemsize
    b_size = jnp.dtype(bias.dtype).itemsize
    o_size = jnp.dtype(out_dtype).itemsize

    # dtype-native sublane multiple: 8 for f32, 16 for bf16, 32 for int8/fp8.
    sublane = max(8, 32 // max(x_size, 1))
    tm = max(sublane, min(tm, _round_up(M, sublane)))
    tn = max(128, min(tn, _round_up(V, 128)))

    budget = _vmem_budget_bytes()

    def vmem_est(tm_, tn_, w_bufs):
        # double-buffered x and output, w_bufs weight buffers, 2 bias strips
        # (bias strip padded to 8 sublanes in VMEM).
        return (2 * tm_ * E * x_size
                + w_bufs * tn_ * E * w_size
                + 2 * tm_ * tn_ * o_size
                + 2 * 8 * tn_ * b_size)

    # Adaptive shrink so the pipelined working set fits the per-core budget
    # (this is what keeps v7x's 64 MiB/TC happy while v5e/v6e keep big tiles).
    while vmem_est(tm, tn, 2) > budget and tn > 256:
        tn //= 2
    while vmem_est(tm, tn, 2) > budget and tm > 2 * sublane:
        tm //= 2
    tm = _round_up(tm, sublane)
    tn = _round_up(tn, 128)

    deep_weight = vmem_est(tm, tn, 3) <= budget and hasattr(pl, "Buffered")

    v_tiles = pl.cdiv(V, tn)
    m_tiles = pl.cdiv(M, tm)

    cost = pl.CostEstimate(
        flops=2 * M * E * V,
        transcendentals=0,
        bytes_accessed=M * E * x_size + V * E * w_size + V * b_size + M * V * o_size,
    )

    def _build(deep: bool):
        if deep:
            # Start the next weight tile's DMA >1 inner step before the
            # vocab-tile boundary.
            w_spec = pl.BlockSpec((tn, E), lambda j, i: (j, 0),
                                  pipeline_mode=pl.Buffered(3))
        else:
            w_spec = pl.BlockSpec((tn, E), lambda j, i: (j, 0))
        return pl.pallas_call(
            _lmhead_kernel,
            out_shape=jax.ShapeDtypeStruct((M, V), out_dtype),
            grid_spec=pltpu.PrefetchScalarGridSpec(
                num_scalar_prefetch=0,
                # Vocab tile is the OUTER axis: the (tn, E) weight tile and its
                # bias strip are DMA'd once and stay resident across the M sweep.
                grid=(v_tiles, m_tiles),
                in_specs=[
                    pl.BlockSpec((tm, E), lambda j, i: (i, 0)),   # activations
                    w_spec,                                       # weight rows (V, E)
                    pl.BlockSpec((1, tn), lambda j, i: (0, j)),   # bias strip
                ],
                out_specs=pl.BlockSpec((tm, tn), lambda j, i: (i, j)),
            ),
            compiler_params=pltpu.CompilerParams(
                dimension_semantics=("parallel", "parallel"),
                vmem_limit_bytes=int(budget),
            ),
            cost_estimate=cost,
        )

    if deep_weight:
        try:
            out2d = _build(True)(x2d, weight, b2d)
            return out2d.reshape(B, S, V)
        except Exception:
            pass  # defensive fallback if this jax build rejects pipeline_mode
    out2d = _build(False)(x2d, weight, b2d)
    return out2d.reshape(B, S, V)   # free reshape: output already (M, V)


if __name__ == "__main__":
    key = jax.random.PRNGKey(0)

    def make_case(k, batch, seq, embed, vocab):
        kx, kw, kb = jax.random.split(k, 3)
        x = jax.random.normal(kx, (batch, seq, embed), dtype=jnp.float32)
        bound = 1.0 / jnp.sqrt(embed)
        weight = jax.random.uniform(kw, (vocab, embed), jnp.float32, -bound, bound)
        bias = jax.random.uniform(kb, (vocab,), jnp.float32, -bound, bound)
        return x, weight, bias

    k1, k2 = jax.random.split(key)

    # Case 1: aligned shapes (matches the module's expected use).
    batch, seq, embed, vocab = 2, 8, 32, 256
    x, weight, bias = make_case(k1, batch, seq, embed, vocab)
    out = jax.block_until_ready(lm_head(x, weight, bias))
    ref = x @ weight.T + bias
    assert out.shape == (batch, seq, vocab)
    assert jnp.allclose(out, ref, atol=1e-5, rtol=1e-5)

    # Case 2: non-aligned shapes exercise the partial (masked) edge blocks
    # -- no host-side padding or output slicing anymore.
    batch2, seq2, embed2, vocab2 = 2, 7, 24, 200
    x2, weight2, bias2 = make_case(k2, batch2, seq2, embed2, vocab2)
    out2 = jax.block_until_ready(lm_head(x2, weight2, bias2))
    ref2 = x2 @ weight2.T + bias2
    assert out2.shape == (batch2, seq2, vocab2)
    assert jnp.allclose(out2, ref2, atol=1e-5, rtol=1e-5)

    print("KERNEL_OK")
</pallas_src>

<mosaic_0001>
module attributes {stable_mosaic.version = 11 : i64} {
  func.func @_lmhead_kernel(%arg0: i32, %arg1: i32, %arg2: memref<16x32xf32, #tpu.memory_space<vmem>>, %arg3: memref<256x32xf32, #tpu.memory_space<vmem>>, %arg4: memref<1x256xf32, #tpu.memory_space<vmem>>, %arg5: memref<16x256xf32, #tpu.memory_space<vmem>>) attributes {dimension_semantics = [#tpu.dimension_semantics<parallel>, #tpu.dimension_semantics<parallel>], iteration_bounds = array<i64: 1, 1>, scalar_prefetch = 0 : i64, scratch_operands = 0 : i64, tpu.core_type = #tpu.core_type<tc>, window_params = [{transform_indices = @transform_0, window_bounds = array<i64: 16, 32>}, {transform_indices = @transform_1, window_bounds = array<i64: 256, 32>}, {transform_indices = @transform_2, window_bounds = array<i64: 1, 256>}, {transform_indices = @transform_3, window_bounds = array<i64: 16, 256>}]} {
    %c0 = arith.constant 0 : index
    %c0_0 = arith.constant 0 : index
    %0 = vector.load %arg2[%c0, %c0_0] : memref<16x32xf32, #tpu.memory_space<vmem>>, vector<16x32xf32>
    %c0_1 = arith.constant 0 : index
    %c0_2 = arith.constant 0 : index
    %1 = vector.load %arg3[%c0_1, %c0_2] : memref<256x32xf32, #tpu.memory_space<vmem>>, vector<256x32xf32>
    %cst = arith.constant dense<0.000000e+00> : vector<16x256xf32>
    %2 = tpu.matmul %0, %1, %cst {dimension_numbers = #tpu.dot_dimension_numbers<[1], [1], [0], [0], [0, 0, 1, 0], [], []>} : vector<16x32xf32>, vector<256x32xf32>, vector<16x256xf32> -> vector<16x256xf32>
    %c0_3 = arith.constant 0 : index
    %c0_4 = arith.constant 0 : index
    %3 = vector.load %arg4[%c0_3, %c0_4] : memref<1x256xf32, #tpu.memory_space<vmem>>, vector<1x256xf32>
    %4 = vector.broadcast %3 : vector<1x256xf32> to vector<16x256xf32>
    %5 = arith.addf %2, %4 : vector<16x256xf32>
    %c0_5 = arith.constant 0 : index
    %c0_6 = arith.constant 0 : index
    %6 = vector.load %arg5[%c0_5, %c0_6] : memref<16x256xf32, #tpu.memory_space<vmem>>, vector<16x256xf32>
    tpu.vector_store %arg5[%c0_5, %c0_6], %5 {strides = array<i32>} : memref<16x256xf32, #tpu.memory_space<vmem>>, vector<16x256xf32>,
    return
  }
  func.func @transform_0(%arg0: i32, %arg1: i32) -> (i32, i32) {
    %c0_i32 = arith.constant 0 : i32
    %c0_i32_0 = arith.constant 0 : i32
    return %arg1, %c0_i32 : i32, i32
  }
  func.func @transform_1(%arg0: i32, %arg1: i32) -> (i32, i32) {
    %c0_i32 = arith.constant 0 : i32
    %c0_i32_0 = arith.constant 0 : i32
    return %arg0, %c0_i32 : i32, i32
  }
  func.func @transform_2(%arg0: i32, %arg1: i32) -> (i32, i32) {
    %c0_i32 = arith.constant 0 : i32
    %c0_i32_0 = arith.constant 0 : i32
    return %c0_i32, %arg0 : i32, i32
  }
  func.func @transform_3(%arg0: i32, %arg1: i32) -> (i32, i32) {
    %c0_i32 = arith.constant 0 : i32
    return %arg1, %arg0 : i32, i32
  }
}

</mosaic_0001>

<llo_original>
// kernel: tpu_custom_call.1
$region0: #{tpu_custom_call.1}
  #allocation0 [shape = 'u32[]', space=smem, size = 0x4, offset = 0x4, fixed_abs, tag = 'smem constant byte address 0x4 - core index']
  #allocation1 [shape = 'u32[72,128]{1,0:T(1,128)}', space=vmem, size = 0x9000, scoped, tag = 'internal scratch']
  %s0 = inlined_call_operand.vmem [shape: f32[16,32], index: 0, kind: input, shape index: {}]
  %s1 = inlined_call_operand.vmem [shape: f32[256,32], index: 1, kind: input, shape index: {}]
  %s2 = inlined_call_operand.vmem [shape: f32[1,256], index: 2, kind: input, shape index: {}]
  %s3 = inlined_call_operand.hbm [shape: f32[16,256], index: 3, kind: output, shape index: {}]
  %s4 = sld [smem:[#allocation0]]
  $region22: #{tpu_custom_call.1} parent=0
    _
  %s6 = ssub.s32 1, %s4
  %s7 = scalar_select 0, %s6, %s4
  $region1: #{tpu_custom_call.1} parent=0
    #allocation2 [shape = 'u8[16384]{0}', space=vmem, size = 0x4000, scoped, tag = 'output window, operand 0, single buffered']
    #allocation3 [shape = 's32[1]{0}', space=sflag, size = 0x4, scoped, tag = 'scoped memory for tpu_custom_call.1']
    %8 = vsyncpa [#allocation3], 0
    // Predicated region
    $region2: #{tpu_custom_call.1} parent=1 // pred_check
      _
    $region3: #{tpu_custom_call.1} parent=1 // pred_check_branch
      %10 = sbr.rel (0) target = $region5
    $region4: #{tpu_custom_call.1} parent=1 // pred_region
      _
    $region5: #{tpu_custom_call.1} parent=1 // pred_fallthru
      _
    // Predicated region
    $region6: #{tpu_custom_call.1} parent=1 // pred_check
      _
    $region7: #{tpu_custom_call.1} parent=1 // pred_check_branch
      %12 = sbr.rel (0) target = $region9
    $region8: #{tpu_custom_call.1} parent=1 // pred_region
      _
    $region9: #{tpu_custom_call.1} parent=1 // pred_fallthru
      _
    // Predicated region
    $region10: #{tpu_custom_call.1} parent=1 // pred_check
      _
    $region11: #{tpu_custom_call.1} parent=1 // pred_check_branch
      %14 = sbr.rel (0) target = $region13
    $region12: #{tpu_custom_call.1} parent=1 // pred_region
      _
    $region13: #{tpu_custom_call.1} parent=1 // pred_fallthru
      _
    %v15 = vld [vmem:[%s0] sm:$0xff]
    %v16 = vld [vmem:[%s0 + $0x8] sm:$0xff]
    %v17 = vld [vmem:[%s1] sm:$0xff]
    %v18 = vld [vmem:[%s1 + $0x8] sm:$0xff]
    %v19 = vld [vmem:[%s1 + $0x10] sm:$0xff]
    %v20 = vld [vmem:[%s1 + $0x18] sm:$0xff]
    %v21 = vld [vmem:[%s1 + $0x20] sm:$0xff]
    %v22 = vld [vmem:[%s1 + $0x28] sm:$0xff]
    %v23 = vld [vmem:[%s1 + $0x30] sm:$0xff]
    %v24 = vld [vmem:[%s1 + $0x38] sm:$0xff]
    %v25 = vld [vmem:[%s1 + $0x40] sm:$0xff]
    %v26 = vld [vmem:[%s1 + $0x48] sm:$0xff]
    %v27 = vld [vmem:[%s1 + $0x50] sm:$0xff]
    %v28 = vld [vmem:[%s1 + $0x58] sm:$0xff]
    %v29 = vld [vmem:[%s1 + $0x60] sm:$0xff]
    %v30 = vld [vmem:[%s1 + $0x68] sm:$0xff]
    %v31 = vld [vmem:[%s1 + $0x70] sm:$0xff]
    %v32 = vld [vmem:[%s1 + $0x78] sm:$0xff]
    %v33 = vld [vmem:[%s1 + $0x80] sm:$0xff]
    %v34 = vld [vmem:[%s1 + $0x88] sm:$0xff]
    %v35 = vld [vmem:[%s1 + $0x90] sm:$0xff]
    %v36 = vld [vmem:[%s1 + $0x98] sm:$0xff]
    %v37 = vld [vmem:[%s1 + $0xa0] sm:$0xff]
    %v38 = vld [vmem:[%s1 + $0xa8] sm:$0xff]
    %v39 = vld [vmem:[%s1 + $0xb0] sm:$0xff]
    %v40 = vld [vmem:[%s1 + $0xb8] sm:$0xff]
    %v41 = vld [vmem:[%s1 + $0xc0] sm:$0xff]
    %v42 = vld [vmem:[%s1 + $0xc8] sm:$0xff]
    %v43 = vld [vmem:[%s1 + $0xd0] sm:$0xff]
    %v44 = vld [vmem:[%s1 + $0xd8] sm:$0xff]
    %v45 = vld [vmem:[%s1 + $0xe0] sm:$0xff]
    %v46 = vld [vmem:[%s1 + $0xe8] sm:$0xff]
    %v47 = vld [vmem:[%s1 + $0xf0] sm:$0xff]
    %v48 = vld [vmem:[%s1 + $0xf8] sm:$0xff]
    %v49 = vld [vmem:[%s2] sm:$0x3]
    %v51 = vperm.slane %v49, 0
    %v52 = vperm.slane %v49, 1
    %vm55 = vcmask 261120
    %v57 = vsel %vm55, %v15, 0
    %v60 = vsel %vm55, %v16, 0
    %v63 = vsel %vm55, %v17, 0
    %v66 = vsel %vm55, %v18, 0
    %v69 = vsel %vm55, %v19, 0
    %v72 = vsel %vm55, %v20, 0
    %v75 = vsel %vm55, %v21, 0
    %v78 = vsel %vm55, %v22, 0
    %v81 = vsel %vm55, %v23, 0
    %v84 = vsel %vm55, %v24, 0
    %v87 = vsel %vm55, %v25, 0
    %v90 = vsel %vm55, %v26, 0
    %v93 = vsel %vm55, %v27, 0
    %v96 = vsel %vm55, %v28, 0
    %v99 = vsel %vm55, %v29, 0
    %v102 = vsel %vm55, %v30, 0
    %v105 = vsel %vm55, %v31, 0
    %v108 = vsel %vm55, %v32, 0
    %v111 = vsel %vm55, %v33, 0
    %v114 = vsel %vm55, %v34, 0
    %v117 = vsel %vm55, %v35, 0
    %v120 = vsel %vm55, %v36, 0
    %v123 = vsel %vm55, %v37, 0
    %v126 = vsel %vm55, %v38, 0
    %v129 = vsel %vm55, %v39, 0
    %v132 = vsel %vm55, %v40, 0
    %v135 = vsel %vm55, %v41, 0
    %v138 = vsel %vm55, %v42, 0
    %v141 = vsel %vm55, %v43, 0
    %v144 = vsel %vm55, %v44, 0
    %v147 = vsel %vm55, %v45, 0
    %v150 = vsel %vm55, %v46, 0
    %v153 = vsel %vm55, %v47, 0
    %v156 = vsel %vm55, %v48, 0
    %158 = vmatpush.xpose.msra.mxu0 %v108
    %159 = vmatpush.xpose.msra.mxu0 %v105
    %160 = vmatpush.xpose.msra.mxu0 %v102
    %161 = vmatpush.xpose.msra.mxu0 %v99
    %162 = vmatpush.xpose.msra.mxu0 %v96
    %163 = vmatpush.xpose.msra.mxu0 %v93
    %164 = vmatpush.xpose.msra.mxu0 %v90
    %165 = vmatpush.xpose.msra.mxu0 %v87
    %166 = vmatpush.xpose.msra.mxu0 %v84
    %167 = vmatpush.xpose.msra.mxu0 %v81
    %168 = vmatpush.xpose.msra.mxu0 %v78
    %169 = vmatpush.xpose.msra.mxu0 %v75
    %170 = vmatpush.xpose.msra.mxu0 %v72
    %171 = vmatpush.xpose.msra.mxu0 %v69
    %172 = vmatpush.xpose.msra.mxu0 %v66
    %173 = vmatpush.xpose.msra.mxu0 %v63
    %174 = vmatmul.f32.gmra.mxu0 %v57
    %v175 = vpop.f32.mrf.mxu0
    %v176 = vadd.f32 %v51, %v175
    %177 = vmatmul.f32.gmra.mxu0 %v60
    %v178 = vpop.f32.mrf.mxu0
    %v179 = vadd.f32 %v51, %v178
    %180 = vdwg.mxu0
    %181 = vmatpush.xpose.msra.mxu0 %v156
    %182 = vmatpush.xpose.msra.mxu0 %v153
    %183 = vmatpush.xpose.msra.mxu0 %v150
    %184 = vmatpush.xpose.msra.mxu0 %v147
    %185 = vmatpush.xpose.msra.mxu0 %v144
    %186 = vmatpush.xpose.msra.mxu0 %v141
    %187 = vmatpush.xpose.msra.mxu0 %v138
    %188 = vmatpush.xpose.msra.mxu0 %v135
    %189 = vmatpush.xpose.msra.mxu0 %v132
    %190 = vmatpush.xpose.msra.mxu0 %v129
    %191 = vmatpush.xpose.msra.mxu0 %v126
    %192 = vmatpush.xpose.msra.mxu0 %v123
    %193 = vmatpush.xpose.msra.mxu0 %v120
    %194 = vmatpush.xpose.msra.mxu0 %v117
    %195 = vmatpush.xpose.msra.mxu0 %v114
    %196 = vmatpush.xpose.msra.mxu0 %v111
    %197 = vmatmul.f32.gmra.mxu0 %v57
    %v198 = vpop.f32.mrf.mxu0
    %v199 = vadd.f32 %v52, %v198
    %200 = vmatmul.f32.gmra.mxu0 %v60
    %v201 = vpop.f32.mrf.mxu0
    %v202 = vadd.f32 %v52, %v201
    %203 = vdwg.mxu0
    %204 = vst [vmem:[#allocation2] sm:$0xff] %v176
    %205 = vst [vmem:[#allocation2 + $0x8] sm:$0xff] %v199
    %206 = vst [vmem:[#allocation2 + $0x10] sm:$0xff] %v179
    %207 = vst [vmem:[#allocation2 + $0x18] sm:$0xff] %v202
    // Predicated region
    $region14: #{tpu_custom_call.1} parent=1 // pred_check
      _
    $region15: #{tpu_custom_call.1} parent=1 // pred_check_branch
      %209 = sbr.rel (0) target = $region17
    $region16: #{tpu_custom_call.1} parent=1 // pred_region
      %211 = vsyncadd [#allocation3], 0
      %s212 = sshll.u32 [#allocation2], 4
      %s213 = int_to_ptr.vmem [resolvable:$true] %s212
      %s214 = sshll.u32 %s3, 4
      %s215 = int_to_ptr.hbm [resolvable:$true] %s214
      %220 = dma.vmem_to_hbm [thread:$0]  %s213, 512, %s215, [#allocation3], 256, 256, 16
    $region17: #{tpu_custom_call.1} parent=1 // pred_fallthru
      _
    // Predicated region
    $region18: #{tpu_custom_call.1} parent=1 // pred_check
      _
    $region19: #{tpu_custom_call.1} parent=1 // pred_check_branch
      %222 = sbr.rel (0) target = $region21
    $region20: #{tpu_custom_call.1} parent=1 // pred_region
      %224 = dma.done [#allocation3], 512
    $region21: #{tpu_custom_call.1} parent=1 // pred_fallthru
      _
    %225 = vsyncpa [#allocation3], 1

</llo_original>
